<compile_context>
chip_gen: v6e
topology: v6e:2x2x1
jax: 0.10.0
libtpu: 0.0.40
codegen_flags: <defaults>
</compile_context>

<pallas_src>
import jax
import jax.numpy as jnp
from jax import lax
from jax.experimental import pallas as pl
from jax.experimental.pallas import tpu as pltpu


def temporal_attention_kernel(q_ref, k_ref, v_ref, o_ref):
    # q_ref: (C, tq)   lane-dense query tile
    # k_ref: (C, F)    resident keys
    # v_ref: (C+1, F)  resident values, last row = all ones (denominator row)
    # o_ref: (C, tq)   output tile ((attn @ V)^T slice)
    q = q_ref[...]
    k = k_ref[...]
    v = v_ref[...]

    # logits[i, j] = sum_c Q[i, c] * K[j, c]   (== (Q @ K^T) rows of this tile;
    # both transposes folded into the MXU contraction over the C axis).
    logits = lax.dot_general(
        q, k,
        dimension_numbers=(((0,), (0,)), ((), ())),
        preferred_element_type=jnp.float32)              # (tq, F)

    # Numerically-stable, UNNORMALIZED softmax — normalization is deferred
    # until after the second matmul.
    m = jnp.max(logits, axis=-1, keepdims=True)          # (tq, 1)
    p = jnp.exp(logits - m)                               # (tq, F)

    # out_aug[c, i] = sum_j v_aug[c, j] * p[i, j]
    #   rows 0..C-1 : unnormalized (attn @ V)^T
    #   row  C      : sum_j p[i, j]  == softmax denominator (ones row of v_aug)
    out_aug = lax.dot_general(
        v, p,
        dimension_numbers=(((1,), (1,)), ((), ())),
        preferred_element_type=jnp.float32)              # (C + 1, tq)

    c = o_ref.shape[0]
    inv_denom = pl.reciprocal(out_aug[c:c + 1, :], approx=False)   # (1, tq)
    o_ref[...] = (out_aug[:c, :] * inv_denom).astype(o_ref.dtype)


def _round_up(x, m):
    return (x + m - 1) // m * m


def temporal_attention(x, query, key, value):
    """x: (B, T, F); query/key/value: (F, C). Returns (B, C, F)."""
    batch_size = x.shape[0]
    num_freqs, num_channels = query.shape
    assert x.shape[-1] == num_freqs
    F = num_freqs
    C = num_channels

    # Lane-dense (C, F) layouts (free transposes in the XLA wrapper).  The
    # appended all-ones row on V makes the second MXU matmul emit the softmax
    # denominator as its last output row.
    q_cf = jnp.transpose(query)                                    # (C, F)
    k_cf = jnp.transpose(key)                                      # (C, F)
    v_aug = jnp.concatenate(
        [jnp.transpose(value), jnp.ones((1, F), value.dtype)], axis=0)  # (C+1, F)

    # Query-row tiling: parallel grid axis (uses both TCs on v7x) and bounds
    # the logits working set to (tq, F).  Keys/values stay resident.
    if F <= 512:
        tq, f_pad = F, F
    else:
        f_pad = _round_up(F, 128)
        tq = 512 if f_pad % 512 == 0 else (256 if f_pad % 256 == 0 else 128)
    if f_pad != F:
        # Padded query rows produce garbage output rows that are sliced off;
        # the key axis is never padded, so the softmax stays exact.
        q_cf = jnp.pad(q_cf, ((0, 0), (0, f_pad - F)))
    grid = (f_pad // tq,)

    # Generation-aware VMEM budget with headroom (v7x has only 64 MiB per TC).
    f32b = 4
    est_bytes = f32b * (
        2 * (C * tq + C * F + (C + 1) * F + C * tq)   # double-buffered blocks
        + 3 * tq * F                                  # logits / exp temporaries
        + (C + 2) * tq)                               # out_aug / denom
    try:
        info = pltpu.get_tpu_info()
        vmem_cap = int(getattr(info, "vmem_capacity_bytes", 64 * 1024 * 1024))
    except Exception:  # pragma: no cover - conservative fallback
        vmem_cap = 64 * 1024 * 1024
    vmem_limit = int(min(max(2 * est_bytes, 16 * 1024 * 1024),
                         max(int(0.75 * vmem_cap), 16 * 1024 * 1024)))

    cost = pl.CostEstimate(
        flops=2 * f_pad * F * (2 * C + 1),            # both MXU matmuls
        transcendentals=f_pad * F,                     # exp dominates small-C
        bytes_accessed=f32b * (2 * C * f_pad + (2 * C + 1) * F))

    out_cf = pl.pallas_call(
        temporal_attention_kernel,
        out_shape=jax.ShapeDtypeStruct((C, f_pad), jnp.float32),
        grid=grid,
        in_specs=[
            pl.BlockSpec((C, tq), lambda i: (0, i)),          # query tile
            pl.BlockSpec((C, F), lambda i: (0, 0)),           # keys (resident)
            pl.BlockSpec((C + 1, F), lambda i: (0, 0)),       # values+ones
        ],
        out_specs=pl.BlockSpec((C, tq), lambda i: (0, i)),
        compiler_params=pltpu.CompilerParams(
            dimension_semantics=("parallel",),
            vmem_limit_bytes=vmem_limit),
        cost_estimate=cost,
    )(q_cf, k_cf, v_aug)

    if f_pad != F:
        out_cf = out_cf[:, :F]

    # The result is identical for every batch element (x's values are unused):
    # the batch dimension is a free broadcast in the XLA wrapper.
    return jnp.broadcast_to(out_cf[None, :, :], (batch_size, C, F))


def temporal_attention_ref(x, query, key, value):
    """Pure-JAX reference mirroring the PyTorch forward."""
    batch_size = x.shape[0]
    q = jnp.broadcast_to(query[None], (batch_size,) + query.shape)
    k = jnp.broadcast_to(key[None], (batch_size,) + key.shape)
    v = jnp.broadcast_to(value[None], (batch_size,) + value.shape)
    logits = jnp.einsum("bfc,bgc->bfg", q, k)
    attn = jax.nn.softmax(logits, axis=-1)
    out = jnp.einsum("bfg,bgc->bfc", attn, v)
    return jnp.swapaxes(out, -1, -2)


if __name__ == "__main__":
    # Small, deterministic example shapes:
    #   batch=2, seq(T)=4, num_freqs=16, num_channels=8
    batch, seq, num_freqs, num_channels = 2, 4, 16, 8

    root = jax.random.PRNGKey(0)
    kx, kq, kk, kv = jax.random.split(root, 4)

    x = jax.random.normal(kx, (batch, seq, num_freqs), dtype=jnp.float32)
    # Deterministic stand-ins for the module's per-forward nn.init.normal_
    # parameters (the PyTorch module draws fresh randoms every call).
    query = jax.random.normal(kq, (num_freqs, num_channels), dtype=jnp.float32)
    key = jax.random.normal(kk, (num_freqs, num_channels), dtype=jnp.float32)
    value = jax.random.normal(kv, (num_freqs, num_channels), dtype=jnp.float32)

    out = temporal_attention(x, query, key, value)
    out = jax.block_until_ready(out)

    ref = temporal_attention_ref(x, query, key, value)
    assert out.shape == (batch, num_channels, num_freqs)
    assert jnp.allclose(out, ref, atol=1e-5, rtol=1e-5)

    print("KERNEL_OK")
</pallas_src>

<mosaic_0001>
module attributes {stable_mosaic.version = 11 : i64} {
  func.func @temporal_attention_kernel(%arg0: i32, %arg1: memref<8x16xf32, #tpu.memory_space<vmem>>, %arg2: memref<8x16xf32, #tpu.memory_space<vmem>>, %arg3: memref<9x16xf32, #tpu.memory_space<vmem>>, %arg4: memref<8x16xf32, #tpu.memory_space<vmem>>) attributes {dimension_semantics = [#tpu.dimension_semantics<parallel>], iteration_bounds = array<i64: 1>, scalar_prefetch = 0 : i64, scratch_operands = 0 : i64, tpu.core_type = #tpu.core_type<tc>, window_params = [{transform_indices = @transform_0, window_bounds = array<i64: 8, 16>}, {pipeline_mode = #tpu.pipeline_mode<synchronous>, transform_indices = @transform_1, window_bounds = array<i64: 8, 16>}, {pipeline_mode = #tpu.pipeline_mode<synchronous>, transform_indices = @transform_2, window_bounds = array<i64: 9, 16>}, {transform_indices = @transform_3, window_bounds = array<i64: 8, 16>}]} {
    %c0 = arith.constant 0 : index
    %c0_0 = arith.constant 0 : index
    %0 = vector.load %arg1[%c0, %c0_0] : memref<8x16xf32, #tpu.memory_space<vmem>>, vector<8x16xf32>
    %c0_1 = arith.constant 0 : index
    %c0_2 = arith.constant 0 : index
    %1 = vector.load %arg2[%c0_1, %c0_2] : memref<8x16xf32, #tpu.memory_space<vmem>>, vector<8x16xf32>
    %c0_3 = arith.constant 0 : index
    %c0_4 = arith.constant 0 : index
    %2 = vector.load %arg3[%c0_3, %c0_4] : memref<9x16xf32, #tpu.memory_space<vmem>>, vector<9x16xf32>
    %cst = arith.constant dense<0.000000e+00> : vector<16x16xf32>
    %3 = tpu.matmul %0, %1, %cst {dimension_numbers = #tpu.dot_dimension_numbers<[0], [0], [1], [1], [0, 1, 1, 1], [], []>} : vector<8x16xf32>, vector<8x16xf32>, vector<16x16xf32> -> vector<16x16xf32>
    %cst_5 = arith.constant dense<0xFF800000> : vector<16xf32>
    %4 = vector.multi_reduction <maximumf>, %3, %cst_5 [1] : vector<16x16xf32> to vector<16xf32>
    %5 = vector.shape_cast %4 : vector<16xf32> to vector<16x1xf32>
    %6 = vector.broadcast %5 : vector<16x1xf32> to vector<16x16xf32>
    %7 = arith.subf %3, %6 : vector<16x16xf32>
    %8 = math.exp %7 : vector<16x16xf32>
    %cst_6 = arith.constant dense<0.000000e+00> : vector<9x16xf32>
    %9 = tpu.matmul %2, %8, %cst_6 {dimension_numbers = #tpu.dot_dimension_numbers<[1], [1], [0], [0], [0, 0, 1, 0], [], []>} : vector<9x16xf32>, vector<16x16xf32>, vector<9x16xf32> -> vector<9x16xf32>
    %10 = vector.extract_strided_slice %9 {offsets = [8, 0], sizes = [1, 16], strides = [1, 1]} : vector<9x16xf32> to vector<1x16xf32>
    %11 = tpu.reciprocal %10 : vector<1x16xf32> -> vector<1x16xf32>
    %12 = vector.extract_strided_slice %9 {offsets = [0, 0], sizes = [8, 16], strides = [1, 1]} : vector<9x16xf32> to vector<8x16xf32>
    %13 = vector.broadcast %11 : vector<1x16xf32> to vector<8x16xf32>
    %14 = arith.mulf %12, %13 : vector<8x16xf32>
    %c0_7 = arith.constant 0 : index
    %c0_8 = arith.constant 0 : index
    %15 = vector.load %arg4[%c0_7, %c0_8] : memref<8x16xf32, #tpu.memory_space<vmem>>, vector<8x16xf32>
    tpu.vector_store %arg4[%c0_7, %c0_8], %14 {strides = array<i32>} : memref<8x16xf32, #tpu.memory_space<vmem>>, vector<8x16xf32>,
    return
  }
  func.func @transform_0(%arg0: i32) -> (i32, i32) {
    %c0_i32 = arith.constant 0 : i32
    %c0_i32_0 = arith.constant 0 : i32
    return %c0_i32, %arg0 : i32, i32
  }
  func.func @transform_1(%arg0: i32) -> (i32, i32) {
    %c0_i32 = arith.constant 0 : i32
    %c0_i32_0 = arith.constant 0 : i32
    %c0_i32_1 = arith.constant 0 : i32
    return %c0_i32, %c0_i32_0 : i32, i32
  }
  func.func @transform_2(%arg0: i32) -> (i32, i32) {
    %c0_i32 = arith.constant 0 : i32
    %c0_i32_0 = arith.constant 0 : i32
    %c0_i32_1 = arith.constant 0 : i32
    return %c0_i32, %c0_i32_0 : i32, i32
  }
  func.func @transform_3(%arg0: i32) -> (i32, i32) {
    %c0_i32 = arith.constant 0 : i32
    %c0_i32_0 = arith.constant 0 : i32
    return %c0_i32, %arg0 : i32, i32
  }
}

</mosaic_0001>

<llo_original>
// kernel: tpu_custom_call.1
$region0: #{tpu_custom_call.1}
  #allocation0 [shape = 'u32[]', space=smem, size = 0x4, offset = 0x4, fixed_abs, tag = 'smem constant byte address 0x4 - core index']
  #allocation1 [shape = 'u32[144,128]{1,0:T(1,128)}', space=vmem, size = 0x12000, scoped, tag = 'internal scratch']
  %s0 = inlined_call_operand.hbm [shape: f32[8,16], index: 0, kind: input, shape index: {}]
  %s1 = inlined_call_operand.hbm [shape: f32[8,16], index: 1, kind: input, shape index: {}]
  %s2 = inlined_call_operand.hbm [shape: f32[9,16], index: 2, kind: input, shape index: {}]
  %s3 = inlined_call_operand.hbm [shape: f32[8,16], index: 3, kind: output, shape index: {}]
  %s4 = sld [smem:[#allocation0]]
  $region34: #{tpu_custom_call.1} parent=0
    _
  %s6 = ssub.s32 1, %s4
  %s7 = scalar_select 0, %s6, %s4
  $region1: #{tpu_custom_call.1} parent=0
    #allocation2 [shape = 'u8[4096]{0}', space=vmem, size = 0x1000, scoped, tag = 'input window, operand 0, single buffered']
    #allocation3 [shape = 's32[1]{0}', space=sflag, size = 0x4, scoped, tag = 'scoped memory for tpu_custom_call.1']
    #allocation4 [shape = 's32[1]{0}', space=sflag, size = 0x4, scoped, tag = 'scoped memory for tpu_custom_call.1']
    #allocation5 [shape = 'u8[4096]{0}', space=vmem, size = 0x1000, scoped, tag = 'input window, operand 1, single buffered']
    #allocation6 [shape = 's32[1]{0}', space=sflag, size = 0x4, scoped, tag = 'scoped memory for tpu_custom_call.1']
    #allocation7 [shape = 'u8[8192]{0}', space=vmem, size = 0x2000, scoped, tag = 'input window, operand 2, single buffered']
    #allocation8 [shape = 'u8[4096]{0}', space=vmem, size = 0x1000, scoped, tag = 'output window, operand 0, single buffered']
    %8 = vsyncpa [#allocation3], 0
    %9 = vsyncpa [#allocation6], 0
    %10 = vsyncpa [#allocation4], 0
    // Predicated region
    $region2: #{tpu_custom_call.1} parent=1 // pred_check
      _
    $region3: #{tpu_custom_call.1} parent=1 // pred_check_branch
      %12 = sbr.rel (0) target = $region5
    $region4: #{tpu_custom_call.1} parent=1 // pred_region
      %s14 = ssub.s32 128, 128
      %15 = vsyncadd [#allocation3], %s14
      %s17 = sshll.u32 [#allocation2], 4
      %s18 = int_to_ptr.vmem [resolvable:$true] %s17
      %20 = dma.hbm_to_vmem [thread:$0]  %s0, 128, %s18, [#allocation3]
    $region5: #{tpu_custom_call.1} parent=1 // pred_fallthru
      _
    // Predicated region
    $region6: #{tpu_custom_call.1} parent=1 // pred_check
      _
    $region7: #{tpu_custom_call.1} parent=1 // pred_check_branch
      %22 = sbr.rel (0) target = $region9
    $region8: #{tpu_custom_call.1} parent=1 // pred_region
      %s24 = ssub.s32 128, 128
      %25 = vsyncadd [#allocation6], %s24
      %s27 = sshll.u32 [#allocation5], 4
      %s28 = int_to_ptr.vmem [resolvable:$true] %s27
      %30 = dma.hbm_to_vmem [thread:$0]  %s1, 128, %s28, [#allocation6]
    $region9: #{tpu_custom_call.1} parent=1 // pred_fallthru
      _
    // Predicated region
    $region10: #{tpu_custom_call.1} parent=1 // pred_check
      _
    $region11: #{tpu_custom_call.1} parent=1 // pred_check_branch
      %32 = sbr.rel (0) target = $region13
    $region12: #{tpu_custom_call.1} parent=1 // pred_region
      %s34 = ssub.s32 256, 256
      %35 = vsyncadd [#allocation6], %s34
      %s36 = sshll.u32 [#allocation7], 4
      %s37 = int_to_ptr.vmem [resolvable:$true] %s36
      %42 = dma.hbm_to_vmem [thread:$0]  %s2, 256, %s37, [#allocation6], 128, 128, 8
    $region13: #{tpu_custom_call.1} parent=1 // pred_fallthru
      _
    // Predicated region
    $region14: #{tpu_custom_call.1} parent=1 // pred_check
      _
    $region15: #{tpu_custom_call.1} parent=1 // pred_check_branch
      %44 = sbr.rel (0) target = $region17
    $region16: #{tpu_custom_call.1} parent=1 // pred_region
      %45 = dma.done [#allocation3], 128
    $region17: #{tpu_custom_call.1} parent=1 // pred_fallthru
      _
    // Predicated region
    $region18: #{tpu_custom_call.1} parent=1 // pred_check
      _
    $region19: #{tpu_custom_call.1} parent=1 // pred_check_branch
      %47 = sbr.rel (0) target = $region21
    $region20: #{tpu_custom_call.1} parent=1 // pred_region
      %48 = dma.done [#allocation6], 128
    $region21: #{tpu_custom_call.1} parent=1 // pred_fallthru
      _
    // Predicated region
    $region22: #{tpu_custom_call.1} parent=1 // pred_check
      _
    $region23: #{tpu_custom_call.1} parent=1 // pred_check_branch
      %50 = sbr.rel (0) target = $region25
    $region24: #{tpu_custom_call.1} parent=1 // pred_region
      %51 = dma.done [#allocation6], 256
    $region25: #{tpu_custom_call.1} parent=1 // pred_fallthru
      _
    %v52 = vld [vmem:[#allocation2] sm:$0xff]
    %v53 = vld [vmem:[#allocation5] sm:$0xff]
    %v54 = vld [vmem:[#allocation7] sm:$0xff]
    %v55 = vld [vmem:[#allocation7 + $0x8] sm:$0x1]
    %56 = vxpose.xlu0.b32.start [1/16] %v52, 128
    %57 = vxpose.xlu0.b32.cont [2/16] 0.0, 128
    %58 = vxpose.xlu0.b32.cont [3/16] 0.0, 128
    %59 = vxpose.xlu0.b32.cont [4/16] 0.0, 128
    %60 = vxpose.xlu0.b32.cont [5/16] 0.0, 128
    %61 = vxpose.xlu0.b32.cont [6/16] 0.0, 128
    %62 = vxpose.xlu0.b32.cont [7/16] 0.0, 128
    %63 = vxpose.xlu0.b32.cont [8/16] 0.0, 128
    %64 = vxpose.xlu0.b32.cont [9/16] 0.0, 128
    %65 = vxpose.xlu0.b32.cont [10/16] 0.0, 128
    %66 = vxpose.xlu0.b32.cont [11/16] 0.0, 128
    %67 = vxpose.xlu0.b32.cont [12/16] 0.0, 128
    %68 = vxpose.xlu0.b32.cont [13/16] 0.0, 128
    %69 = vxpose.xlu0.b32.cont [14/16] 0.0, 128
    %70 = vxpose.xlu0.b32.cont [15/16] 0.0, 128
    %71 = vxpose.xlu0.b32.end [16/16] 0.0, 128
    %v72 = vpop.trf.xlu0
    %v73 = vpop.trf.xlu0
    %v74 = vpop.trf.xlu0
    %v75 = vpop.trf.xlu0
    %v76 = vpop.trf.xlu0
    %v77 = vpop.trf.xlu0
    %v78 = vpop.trf.xlu0
    %v79 = vpop.trf.xlu0
    %v80 = vpop.trf.xlu0
    %v81 = vpop.trf.xlu0
    %v82 = vpop.trf.xlu0
    %v83 = vpop.trf.xlu0
    %v84 = vpop.trf.xlu0
    %v85 = vpop.trf.xlu0
    %v86 = vpop.trf.xlu0
    %v87 = vpop.trf.xlu0
    %vm88 = vcmask 64512
    %v90 = vsel %vm88, %v72, 0
    %v93 = vsel %vm88, %v73, 0
    %95 = vmatprep.subr.mxu0 0.0
    %96 = vmatpush1.msra.mxu0 0.0
    %97 = vmatprep.subr.mxu0 0.0
    %98 = vmatpush1.msra.mxu0 0.0
    %99 = vmatprep.subr.mxu0 0.0
    %100 = vmatpush1.msra.mxu0 0.0
    %101 = vmatprep.subr.mxu0 0.0
    %102 = vmatpush1.msra.mxu0 0.0
    %103 = vmatprep.subr.mxu0 0.0
    %104 = vmatpush1.msra.mxu0 0.0
    %105 = vmatprep.subr.mxu0 0.0
    %106 = vmatpush1.msra.mxu0 0.0
    %107 = vmatprep.subr.mxu0 0.0
    %108 = vmatpush1.msra.mxu0 0.0
    %109 = vmatprep.subr.mxu0 0.0
    %110 = vmatpush1.msra.mxu0 0.0
    %111 = vmatprep.subr.mxu0 0.0
    %112 = vmatpush1.msra.mxu0 0.0
    %113 = vmatprep.subr.mxu0 0.0
    %114 = vmatpush1.msra.mxu0 0.0
    %115 = vmatprep.subr.mxu0 0.0
    %116 = vmatpush1.msra.mxu0 0.0
    %117 = vmatprep.subr.mxu0 0.0
    %118 = vmatpush1.msra.mxu0 0.0
    %119 = vmatprep.subr.mxu0 0.0
    %120 = vmatpush1.msra.mxu0 0.0
    %121 = vmatprep.subr.mxu0 0.0
    %122 = vmatpush1.msra.mxu0 0.0
    %123 = vmatprep.subr.mxu0 0.0
    %124 = vmatpush1.msra.mxu0 0.0
    %125 = vmatprep.subr.mxu0 0.0
    %126 = vmatpush1.msra.mxu0 %v53
    %127 = vmatprep.subr.mxu0 0.0
    %128 = vmatpush2.msra.mxu0 0.0
    %129 = vmatprep.subr.mxu0 0.0
    %130 = vmatpush2.msra.mxu0 0.0
    %131 = vmatprep.subr.mxu0 0.0
    %132 = vmatpush2.msra.mxu0 0.0
    %133 = vmatprep.subr.mxu0 0.0
    %134 = vmatpush2.msra.mxu0 0.0
    %135 = vmatprep.subr.mxu0 0.0
    %136 = vmatpush2.msra.mxu0 0.0
    %137 = vmatprep.subr.mxu0 0.0
    %138 = vmatpush2.msra.mxu0 0.0
    %139 = vmatprep.subr.mxu0 0.0
    %140 = vmatpush2.msra.mxu0 0.0
    %141 = vmatprep.subr.mxu0 0.0
    %142 = vmatpush2.msra.mxu0 0.0
    %143 = vmatprep.subr.mxu0 0.0
    %144 = vmatpush2.msra.mxu0 0.0
    %145 = vmatprep.subr.mxu0 0.0
    %146 = vmatpush2.msra.mxu0 0.0
    %147 = vmatprep.subr.mxu0 0.0
    %148 = vmatpush2.msra.mxu0 0.0
    %149 = vmatprep.subr.mxu0 0.0
    %150 = vmatpush2.msra.mxu0 0.0
    %151 = vmatprep.subr.mxu0 0.0
    %152 = vmatpush2.msra.mxu0 0.0
    %153 = vmatprep.subr.mxu0 0.0
    %154 = vmatpush2.msra.mxu0 0.0
    %155 = vmatprep.subr.mxu0 0.0
    %156 = vmatpush2.msra.mxu0 0.0
    %157 = vmatprep.subr.mxu0 0.0
    %158 = vmatpush2.msra.mxu0 0.0
    %159 = vmatprep.mubr.f32.mxu0 0.0
    %160 = vmatmul.mubr.f32.gmra.mxu0 %v90
    %v161 = vpop.f32.mrf.mxu0
    %v162 = vadd.f32 0.0, %v161
    %v163 = vpop.f32.mrf.mxu0
    %164 = vmatprep.mubr.f32.mxu0 0.0
    %165 = vmatmul.mubr.f32.gmra.mxu0 %v93
    %v166 = vpop.f32.mrf.mxu0
    %v167 = vadd.f32 0.0, %v166
    %v168 = vpop.f32.mrf.mxu0
    %169 = vdwg.mxu0
    %vm170 = vcmask 130048
    %v171 = vsel %vm170, %v162, -inf
    %172 = vmax.xlane.f32.xlu0 %v171
    %v173 = vpop.xlane.xlu0 %172
    %v174 = vsel %vm170, %v167, -inf
    %175 = vmax.xlane.f32.xlu0 %v174
    %v176 = vpop.xlane.xlu0 %175
    %v177 = vsub.f32 %v162, %v173
    %v178 = vsub.f32 %v167, %v176
    %v179 = vmul.f32 %v177, 1.442695
    %v180 = vpow.pop %v179
    %v181 = vmul.f32 %v178, 1.442695
    %v182 = vpow.pop %v181
    %v184 = vsel %vm170, %v54, 0
    %v187 = vsel %vm170, %v55, 0
    %v190 = vsel %vm170, %v180, 0
    %v193 = vsel %vm170, %v182, 0
    %195 = vmatprep.subr.mxu0 0.0
    %196 = vmatpush1.xpose.msra.mxu0 0.0
    %197 = vmatprep.subr.mxu0 0.0
    %198 = vmatpush1.xpose.msra.mxu0 0.0
    %199 = vmatprep.subr.mxu0 0.0
    %200 = vmatpush1.xpose.msra.mxu0 0.0
    %201 = vmatprep.subr.mxu0 0.0
    %202 = vmatpush1.xpose.msra.mxu0 0.0
    %203 = vmatprep.subr.mxu0 0.0
    %204 = vmatpush1.xpose.msra.mxu0 0.0
    %205 = vmatprep.subr.mxu0 0.0
    %206 = vmatpush1.xpose.msra.mxu0 0.0
    %207 = vmatprep.subr.mxu0 0.0
    %208 = vmatpush1.xpose.msra.mxu0 0.0
    %209 = vmatprep.subr.mxu0 0.0
    %210 = vmatpush1.xpose.msra.mxu0 0.0
    %211 = vmatprep.subr.mxu0 0.0
    %212 = vmatpush1.xpose.msra.mxu0 0.0
    %213 = vmatprep.subr.mxu0 0.0
    %214 = vmatpush1.xpose.msra.mxu0 0.0
    %215 = vmatprep.subr.mxu0 0.0
    %216 = vmatpush1.xpose.msra.mxu0 0.0
    %217 = vmatprep.subr.mxu0 0.0
    %218 = vmatpush1.xpose.msra.mxu0 0.0
    %219 = vmatprep.subr.mxu0 0.0
    %220 = vmatpush1.xpose.msra.mxu0 0.0
    %221 = vmatprep.subr.mxu0 0.0
    %222 = vmatpush1.xpose.msra.mxu0 0.0
    %223 = vmatprep.subr.mxu0 0.0
    %224 = vmatpush1.xpose.msra.mxu0 %v193
    %225 = vmatprep.subr.mxu0 0.0
    %226 = vmatpush1.xpose.msra.mxu0 %v190
    %227 = vmatprep.subr.mxu0 0.0
    %228 = vmatpush2.xpose.msra.mxu0 0.0
    %229 = vmatprep.subr.mxu0 0.0
    %230 = vmatpush2.xpose.msra.mxu0 0.0
    %231 = vmatprep.subr.mxu0 0.0
    %232 = vmatpush2.xpose.msra.mxu0 0.0
    %233 = vmatprep.subr.mxu0 0.0
    %234 = vmatpush2.xpose.msra.mxu0 0.0
    %235 = vmatprep.subr.mxu0 0.0
    %236 = vmatpush2.xpose.msra.mxu0 0.0
    %237 = vmatprep.subr.mxu0 0.0
    %238 = vmatpush2.xpose.msra.mxu0 0.0
    %239 = vmatprep.subr.mxu0 0.0
    %240 = vmatpush2.xpose.msra.mxu0 0.0
    %241 = vmatprep.subr.mxu0 0.0
    %242 = vmatpush2.xpose.msra.mxu0 0.0
    %243 = vmatprep.subr.mxu0 0.0
    %244 = vmatpush2.xpose.msra.mxu0 0.0
    %245 = vmatprep.subr.mxu0 0.0
    %246 = vmatpush2.xpose.msra.mxu0 0.0
    %247 = vmatprep.subr.mxu0 0.0
    %248 = vmatpush2.xpose.msra.mxu0 0.0
    %249 = vmatprep.subr.mxu0 0.0
    %250 = vmatpush2.xpose.msra.mxu0 0.0
    %251 = vmatprep.subr.mxu0 0.0
    %252 = vmatpush2.xpose.msra.mxu0 0.0
    %253 = vmatprep.subr.mxu0 0.0
    %254 = vmatpush2.xpose.msra.mxu0 0.0
    %255 = vmatprep.subr.mxu0 0.0
    %256 = vmatpush2.xpose.msra.mxu0 0.0
    %257 = vmatprep.subr.mxu0 0.0
    %258 = vmatpush2.xpose.msra.mxu0 0.0
    %259 = vmatprep.mubr.f32.mxu0 0.0
    %260 = vmatmul.mubr.f32.gmra.mxu0 %v184
    %v261 = vpop.f32.mrf.mxu0
    %v262 = vadd.f32 0.0, %v261
    %v263 = vpop.f32.mrf.mxu0
    %264 = vmatprep.mubr.f32.mxu0 0.0
    %265 = vmatmul.mubr.f32.gmra.mxu0 %v187
    %v266 = vpop.f32.mrf.mxu0
    %v267 = vadd.f32 0.0, %v266
    %v268 = vpop.f32.mrf.mxu0
    %269 = vdwg.mxu0
    %v270 = vrcp.pop %v267
    %v271 = vlaneseq
    %v272 = vshrl.u32 %v271, 7
    %v273 = vsub.s32 0, %v272
    %v274 = vrot.slane %v270, %v273
    %v275 = vmul.f32 %v262, %v274
    %276 = vst.msk [vmem:[#allocation8] sm:$0xff] %vm170, %v275
    // Predicated region
    $region26: #{tpu_custom_call.1} parent=1 // pred_check
      _
    $region27: #{tpu_custom_call.1} parent=1 // pred_check_branch
      %278 = sbr.rel (0) target = $region29
    $region28: #{tpu_custom_call.1} parent=1 // pred_region
      %s280 = ssub.s32 128, 128
      %281 = vsyncadd [#allocation4], %s280
      %s283 = sshll.u32 [#allocation8], 4
      %s284 = int_to_ptr.vmem [resolvable:$true] %s283
      %286 = dma.vmem_to_hbm [thread:$0]  %s284, 128, %s3, [#allocation4]
    $region29: #{tpu_custom_call.1} parent=1 // pred_fallthru
      _
    // Predicated region
    $region30: #{tpu_custom_call.1} parent=1 // pred_check
      _
    $region31: #{tpu_custom_call.1} parent=1 // pred_check_branch
      %288 = sbr.rel (0) target = $region33
    $region32: #{tpu_custom_call.1} parent=1 // pred_region
      %289 = dma.done [#allocation4], 128
    $region33: #{tpu_custom_call.1} parent=1 // pred_fallthru
      _
    %290 = vsyncpa [#allocation3], 1
    %291 = vsyncpa [#allocation6], 1
    %292 = vsyncpa [#allocation4], 1

</llo_original>
